<compile_context>
chip_gen: v5e
topology: v5e:2x2
jax: 0.10.0
libtpu: 0.0.40
codegen_flags: <defaults>
</compile_context>

<pallas_src>
import jax
import jax.numpy as jnp
from jax import lax
from jax.experimental import pallas as pl
from jax.experimental.pallas import tpu as pltpu


def gesture_mlp_kernel(x_ref, w1_ref, w2_ref, p_ref, o_ref):
    # x_ref : (TB, D)  f32   -- one batch tile (native dtype, cast in-kernel)
    # w1_ref: (32, D)  bf16  -- fc1 weight, transposed (out, in), VMEM-resident
    # w2_ref: (32, 32) bf16  -- fc2 weight, transposed (out, in), VMEM-resident
    # p_ref : (32, 4)  f32   -- col0=b1, col1=b2, col2=w3 column, [0,3]=b3
    # o_ref : (1, TB)  f32   -- lane-dense output slab
    x = x_ref[...].astype(jnp.bfloat16)            # cheap VPU pack, slot has slack

    b1 = p_ref[:, 0:1]                             # (32, 1)
    b2 = p_ref[:, 1:2]                             # (32, 1)
    w3 = p_ref[:, 2:3]                             # (32, 1) f32
    b3 = p_ref[0:1, 3:4]                           # (1, 1)

    # fc1: (32, TB) = w1^T (32, D) . x (TB, D), contracted on the feature dim.
    h1 = lax.dot_general(
        w1_ref[...], x,
        dimension_numbers=(((1,), (1,)), ((), ())),
        preferred_element_type=jnp.float32,
    ) + b1
    h1 = jnp.maximum(h1, 0.0)

    # fc2: (32, TB) = w2^T (32, 32) . h1 (32, TB).
    h2 = lax.dot_general(
        w2_ref[...], h1.astype(jnp.bfloat16),
        dimension_numbers=(((1,), (0,)), ((), ())),
        preferred_element_type=jnp.float32,
    ) + b2
    h2 = jnp.maximum(h2, 0.0)

    # fc3 as VPU multiply + sublane reduction (XLU slot), fully f32 + lane-dense.
    o_ref[...] = jnp.sum(h2 * w3, axis=0, keepdims=True) + b3


def _choose_block_rows(batch, target):
    """Lane-aligned batch tile; >= 2 grid steps when possible (v7x megacore)."""
    b_lanes = pl.cdiv(batch, 128) * 128
    tb = min(target, b_lanes)
    if b_lanes >= 256 and pl.cdiv(b_lanes, tb) < 2:
        tb = pl.cdiv(pl.cdiv(b_lanes, 2), 128) * 128
    return max(tb, 128)


def gesture_model_forward(x, params, *, block_rows=2048):
    """x: (B, in_feat*3) float32. params: dict of w1,b1,w2,b2,w3,b3 (f32)."""
    B, D = x.shape
    TB = _choose_block_rows(B, block_rows)
    n_blocks = pl.cdiv(B, TB)
    B_pad = n_blocks * TB                      # output slab padded; sliced below

    # Weights pre-transposed to (out, in) once, cast to bf16 (MXU-native).
    w1_t = params["w1"].T.astype(jnp.bfloat16)       # (32, D)
    w2_t = params["w2"].T.astype(jnp.bfloat16)       # (32, 32)

    # Pack b1, b2, w3 column and b3 into one small resident f32 tile.
    small = jnp.zeros((32, 4), jnp.float32)
    small = small.at[:, 0].set(params["b1"].reshape(-1))
    small = small.at[:, 1].set(params["b2"].reshape(-1))
    small = small.at[:, 2].set(params["w3"].reshape(-1))
    small = small.at[0, 3].set(params["b3"].reshape(-1)[0])

    flops = 2 * B_pad * (D * 32 + 32 * 32 + 32 * 1)
    bytes_accessed = (B_pad * (D * 4 + 4)            # x in (f32) + y out (f32)
                      + (w1_t.size + w2_t.size) * 2  # bf16 weights
                      + small.size * 4)

    out = pl.pallas_call(
        gesture_mlp_kernel,
        out_shape=jax.ShapeDtypeStruct((1, B_pad), jnp.float32),
        grid=(n_blocks,),
        in_specs=[
            pl.BlockSpec((TB, D), lambda i: (i, 0)),    # x: batch-tiled, ragged tail masked
            pl.BlockSpec((32, D), lambda i: (0, 0)),    # w1^T: VMEM-resident
            pl.BlockSpec((32, 32), lambda i: (0, 0)),   # w2^T: VMEM-resident
            pl.BlockSpec((32, 4), lambda i: (0, 0)),    # packed b1/b2/w3/b3: resident
        ],
        out_specs=pl.BlockSpec((1, TB), lambda i: (0, i)),   # lane-dense output slab
        compiler_params=pltpu.CompilerParams(
            dimension_semantics=("parallel",),          # shards batch axis over v7x's 2 TCs
            vmem_limit_bytes=32 << 20,
        ),
        cost_estimate=pl.CostEstimate(
            flops=flops, transcendentals=0, bytes_accessed=bytes_accessed),
    )(x, w1_t, w2_t, small)

    # Layout plumbing back to the module's (B, 1) output.
    return out[0, :B][:, None]


def init_params(key, in_feat):
    """Deterministic init mimicking nn.Linear's U(-1/sqrt(fan_in), 1/sqrt(fan_in))."""
    d_in = in_feat * 3
    ks = jax.random.split(key, 6)

    def lin(kw, kb, fan_in, fan_out):
        bound = 1.0 / jnp.sqrt(jnp.float32(fan_in))
        w = jax.random.uniform(kw, (fan_in, fan_out), jnp.float32, -bound, bound)
        b = jax.random.uniform(kb, (1, fan_out), jnp.float32, -bound, bound)
        return w, b

    w1, b1 = lin(ks[0], ks[1], d_in, 32)
    w2, b2 = lin(ks[2], ks[3], 32, 32)
    w3, b3 = lin(ks[4], ks[5], 32, 1)
    return {"w1": w1, "b1": b1, "w2": w2, "b2": b2, "w3": w3, "b3": b3}


def reference_forward_f32(x, p):
    h = jnp.maximum(x @ p["w1"] + p["b1"], 0.0)
    h = jnp.maximum(h @ p["w2"] + p["b2"], 0.0)
    return h @ p["w3"] + p["b3"]


def reference_forward_bf16(x, p):
    """Mirrors the kernel's quantization: bf16 fc1/fc2 matmul inputs, f32 fc3."""
    bf = jnp.bfloat16
    h = jnp.dot(x.astype(bf), p["w1"].astype(bf),
                preferred_element_type=jnp.float32) + p["b1"]
    h = jnp.maximum(h, 0.0)
    h = jnp.dot(h.astype(bf), p["w2"].astype(bf),
                preferred_element_type=jnp.float32) + p["b2"]
    h = jnp.maximum(h, 0.0)
    return h @ p["w3"] + p["b3"]


if __name__ == "__main__":
    key = jax.random.PRNGKey(0)
    in_feat = 8            # fc1 expects in_feat*3 = 24 features
    batch = 1000           # not a multiple of 128/TB: exercises ragged-tail masking
    k_x, k_p = jax.random.split(key)

    x = jax.random.normal(k_x, (batch, in_feat * 3), jnp.float32)
    params = init_params(k_p, in_feat)

    out = jax.block_until_ready(gesture_model_forward(x, params))
    assert out.shape == (batch, 1)

    # Tight check vs. a reference that applies the same bf16 quantization.
    ref_q = reference_forward_bf16(x, params)
    assert jnp.allclose(out, ref_q, atol=2e-3, rtol=2e-3), "mismatch vs bf16 reference"

    # Loose check vs. the pure-f32 PyTorch-equivalent forward.
    ref_f = reference_forward_f32(x, params)
    assert jnp.allclose(out, ref_f, atol=5e-2, rtol=5e-2), "mismatch vs f32 reference"

    print("KERNEL_OK")
</pallas_src>

<mosaic_0001>
module attributes {stable_mosaic.version = 11 : i64} {
  func.func @gesture_mlp_kernel(%arg0: i32, %arg1: memref<512x24xf32, #tpu.memory_space<vmem>>, %arg2: memref<32x24xbf16, #tpu.memory_space<vmem>>, %arg3: memref<32x32xbf16, #tpu.memory_space<vmem>>, %arg4: memref<32x4xf32, #tpu.memory_space<vmem>>, %arg5: memref<1x512xf32, #tpu.memory_space<vmem>>) attributes {dimension_semantics = [#tpu.dimension_semantics<parallel>], iteration_bounds = array<i64: 2>, scalar_prefetch = 0 : i64, scratch_operands = 0 : i64, tpu.core_type = #tpu.core_type<tc>, window_params = [{transform_indices = @transform_0, window_bounds = array<i64: 512, 24>}, {pipeline_mode = #tpu.pipeline_mode<synchronous>, transform_indices = @transform_1, window_bounds = array<i64: 32, 24>}, {pipeline_mode = #tpu.pipeline_mode<synchronous>, transform_indices = @transform_2, window_bounds = array<i64: 32, 32>}, {pipeline_mode = #tpu.pipeline_mode<synchronous>, transform_indices = @transform_3, window_bounds = array<i64: 32, 4>}, {transform_indices = @transform_4, window_bounds = array<i64: 1, 512>}]} {
    %c0 = arith.constant 0 : index
    %c0_0 = arith.constant 0 : index
    %0 = vector.load %arg1[%c0, %c0_0] : memref<512x24xf32, #tpu.memory_space<vmem>>, vector<512x24xf32>
    %1 = arith.truncf %0 : vector<512x24xf32> to vector<512x24xbf16>
    %c0_1 = arith.constant 0 : index
    %c0_2 = arith.constant 0 : index
    %2 = vector.load %arg4[%c0_1, %c0_2] : memref<32x4xf32, #tpu.memory_space<vmem>>, vector<32x1xf32>
    %c0_3 = arith.constant 0 : index
    %c1 = arith.constant 1 : index
    %3 = vector.load %arg4[%c0_3, %c1] : memref<32x4xf32, #tpu.memory_space<vmem>>, vector<32x1xf32>
    %c0_4 = arith.constant 0 : index
    %c2 = arith.constant 2 : index
    %4 = vector.load %arg4[%c0_4, %c2] : memref<32x4xf32, #tpu.memory_space<vmem>>, vector<32x1xf32>
    %c0_5 = arith.constant 0 : index
    %c3 = arith.constant 3 : index
    %5 = vector.load %arg4[%c0_5, %c3] : memref<32x4xf32, #tpu.memory_space<vmem>>, vector<1x1xf32>
    %c0_6 = arith.constant 0 : index
    %c0_7 = arith.constant 0 : index
    %6 = vector.load %arg2[%c0_6, %c0_7] : memref<32x24xbf16, #tpu.memory_space<vmem>>, vector<32x24xbf16>
    %cst = arith.constant dense<0.000000e+00> : vector<32x512xf32>
    %7 = tpu.matmul %6, %1, %cst {dimension_numbers = #tpu.dot_dimension_numbers<[1], [1], [0], [0], [0, 0, 1, 0], [], []>} : vector<32x24xbf16>, vector<512x24xbf16>, vector<32x512xf32> -> vector<32x512xf32>
    %8 = vector.broadcast %2 : vector<32x1xf32> to vector<32x512xf32>
    %9 = arith.addf %7, %8 : vector<32x512xf32>
    %cst_8 = arith.constant 0.000000e+00 : f32
    %10 = vector.broadcast %cst_8 : f32 to vector<32x512xf32>
    %11 = arith.maximumf %9, %10 : vector<32x512xf32>
    %c0_9 = arith.constant 0 : index
    %c0_10 = arith.constant 0 : index
    %12 = vector.load %arg3[%c0_9, %c0_10] : memref<32x32xbf16, #tpu.memory_space<vmem>>, vector<32x32xbf16>
    %13 = arith.truncf %11 : vector<32x512xf32> to vector<32x512xbf16>
    %cst_11 = arith.constant dense<0.000000e+00> : vector<32x512xf32>
    %14 = tpu.matmul %12, %13, %cst_11 {dimension_numbers = #tpu.dot_dimension_numbers<[1], [0], [0], [1], [0, 0, 1, 1], [], []>} : vector<32x32xbf16>, vector<32x512xbf16>, vector<32x512xf32> -> vector<32x512xf32>
    %15 = vector.broadcast %3 : vector<32x1xf32> to vector<32x512xf32>
    %16 = arith.addf %14, %15 : vector<32x512xf32>
    %cst_12 = arith.constant 0.000000e+00 : f32
    %17 = vector.broadcast %cst_12 : f32 to vector<32x512xf32>
    %18 = arith.maximumf %16, %17 : vector<32x512xf32>
    %19 = vector.broadcast %4 : vector<32x1xf32> to vector<32x512xf32>
    %20 = arith.mulf %18, %19 : vector<32x512xf32>
    %cst_13 = arith.constant dense<0.000000e+00> : vector<512xf32>
    %21 = vector.multi_reduction <add>, %20, %cst_13 [0] : vector<32x512xf32> to vector<512xf32>
    %22 = vector.shape_cast %21 : vector<512xf32> to vector<1x512xf32>
    %23 = vector.broadcast %5 : vector<1x1xf32> to vector<1x512xf32>
    %24 = arith.addf %22, %23 : vector<1x512xf32>
    %c0_14 = arith.constant 0 : index
    %c0_15 = arith.constant 0 : index
    %25 = vector.load %arg5[%c0_14, %c0_15] : memref<1x512xf32, #tpu.memory_space<vmem>>, vector<1x512xf32>
    tpu.vector_store %arg5[%c0_14, %c0_15], %24 {strides = array<i32>} : memref<1x512xf32, #tpu.memory_space<vmem>>, vector<1x512xf32>,
    return
  }
  func.func @transform_0(%arg0: i32) -> (i32, i32) {
    %c0_i32 = arith.constant 0 : i32
    %c0_i32_0 = arith.constant 0 : i32
    return %arg0, %c0_i32 : i32, i32
  }
  func.func @transform_1(%arg0: i32) -> (i32, i32) {
    %c0_i32 = arith.constant 0 : i32
    %c0_i32_0 = arith.constant 0 : i32
    %c0_i32_1 = arith.constant 0 : i32
    return %c0_i32, %c0_i32_0 : i32, i32
  }
  func.func @transform_2(%arg0: i32) -> (i32, i32) {
    %c0_i32 = arith.constant 0 : i32
    %c0_i32_0 = arith.constant 0 : i32
    %c0_i32_1 = arith.constant 0 : i32
    return %c0_i32, %c0_i32_0 : i32, i32
  }
  func.func @transform_3(%arg0: i32) -> (i32, i32) {
    %c0_i32 = arith.constant 0 : i32
    %c0_i32_0 = arith.constant 0 : i32
    %c0_i32_1 = arith.constant 0 : i32
    return %c0_i32, %c0_i32_0 : i32, i32
  }
  func.func @transform_4(%arg0: i32) -> (i32, i32) {
    %c0_i32 = arith.constant 0 : i32
    %c0_i32_0 = arith.constant 0 : i32
    return %c0_i32, %arg0 : i32, i32
  }
}

</mosaic_0001>

<llo_original>
// kernel: tpu_custom_call.1
$region0: #{tpu_custom_call.1}
  #allocation0 [shape = 'u32[]', space=smem, size = 0x4, offset = 0x4, fixed_abs, tag = 'smem constant byte address 0x4 - core index']
  #allocation1 [shape = 'u32[72,128]{1,0:T(1,128)}', space=vmem, size = 0x9000, scoped, tag = 'internal scratch']
  %s0 = inlined_call_operand.vmem [shape: f32[1000,24], index: 0, kind: input, shape index: {}]
  %s1 = inlined_call_operand.vmem [shape: bf16[32,24], index: 1, kind: input, shape index: {}]
  %s2 = inlined_call_operand.vmem [shape: bf16[32,32], index: 2, kind: input, shape index: {}]
  %s3 = inlined_call_operand.vmem [shape: f32[32,4], index: 3, kind: input, shape index: {}]
  %s4 = inlined_call_operand.hbm [shape: f32[1,1024], index: 4, kind: output, shape index: {}]
  %s5 = sld [smem:[#allocation0]]
  $region49: #{tpu_custom_call.1} parent=0
    _
  %s7 = ssub.s32 1, %s5
  %s8 = scalar_select 0, %s7, %s5
  $region1: #{tpu_custom_call.1} parent=0
    #allocation2 [shape = 'u8[4096]{0}', space=vmem, size = 0x1000, scoped, tag = 'output window, operand 0']
    #allocation3 [shape = 's32[2]{0}', space=sflag, size = 0x8, scoped, tag = 'scoped memory for tpu_custom_call.1']
    %9 = vsyncpa [#allocation3], 0
    %s10 = scalar_lea.sflag [#allocation3], 1
    %11 = vsyncpa %s10, 0
    loop: start=0, step=1, limit=4
    $region2: #{tpu_custom_call.1} parent=1 // loop_pre_header
      _
    $region3: #{tpu_custom_call.1} parent=1 // loop_header
      %s13 = sphi 0, %s17
      %p14 = scmp.ge.s32.totalorder %s13, 4
      %s23 = sphi 0, %s25
      %s26 = sphi 0, %s23
      %s27 = sphi 0, %s26
      %s43 = sphi 0, %s27
      %s47 = sphi 0, %s47
      %s49 = sphi 0, %s47
      %s50 = sphi 0, %s49
      %s64 = sphi 0, %s50
      %s68 = sphi 0, %s68
      %s70 = sphi 0, %s68
      %s71 = sphi 0, %s70
      %s85 = sphi 0, %s71
      %s89 = sphi 0, %s89
      %s91 = sphi 0, %s89
      %s92 = sphi 0, %s91
      %s106 = sphi 0, %s92
      %s112 = sphi 0, %s114
      %s115 = sphi 0, %s112
      %s116 = sphi 0, %s115
      %s132 = sphi 0, %s116
    $region4: #{tpu_custom_call.1} parent=1 // loop_header_branch
      %16 = sbr.rel (%p14) target = $region8
    $region5: #{tpu_custom_call.1} parent=1 // loop_body
      %s18 = ssub.s32 %s13, 1
      %s19 = ssub.s32 %s13, 2
      %s20 = sadd.s32 %s13, 1
      %s21 = ssub.s32 %s13, %s20
      %p22 = scmp.eq.s32.totalorder %s21, 0
      %s24 = sadd.s32 %s23, 1
      %s25 = scalar_select %p22, %s23, %s24
      %p28 = pneg %p22
      %p29 = scmp.eq.s32.totalorder %s13, 1
      %p30 = por %p28, %p29
      %p31 = scmp.ne.s32.totalorder %s23, %s26
      %p32 = scmp.eq.s32.totalorder %s13, 0
      %p33 = por %p31, %p32
      %p34 = scmp.ne.s32.totalorder %s23, %s26
      %p35 = scmp.eq.s32.totalorder %s18, 1
      %p36 = por %p34, %p35
      %p37 = scmp.ne.s32.totalorder %s26, %s27
      %p38 = scmp.eq.s32.totalorder %s18, 0
      %p39 = por %p37, %p38
      %p40 = scmp.ne.s32.totalorder %s26, %s27
      %p41 = scmp.eq.s32.totalorder %s19, 1
      %p42 = por %p40, %p41
      %p44 = scmp.ne.s32.totalorder %s27, %s43
      %p45 = scmp.eq.s32.totalorder %s19, 0
      %p46 = por %p44, %p45
      %s48 = sadd.s32 %s47, 1
      %p51 = scmp.eq.s32.totalorder %s13, 1
      %p52 = scmp.ne.s32.totalorder %s47, %s49
      %p53 = scmp.eq.s32.totalorder %s13, 0
      %p54 = por %p52, %p53
      %p55 = scmp.ne.s32.totalorder %s47, %s49
      %p56 = scmp.eq.s32.totalorder %s18, 1
      %p57 = por %p55, %p56
      %p58 = scmp.ne.s32.totalorder %s49, %s50
      %p59 = scmp.eq.s32.totalorder %s18, 0
      %p60 = por %p58, %p59
      %p61 = scmp.ne.s32.totalorder %s49, %s50
      %p62 = scmp.eq.s32.totalorder %s19, 1
      %p63 = por %p61, %p62
      %p65 = scmp.ne.s32.totalorder %s50, %s64
      %p66 = scmp.eq.s32.totalorder %s19, 0
      %p67 = por %p65, %p66
      %s69 = sadd.s32 %s68, 1
      %p72 = scmp.eq.s32.totalorder %s13, 1
      %p73 = scmp.ne.s32.totalorder %s68, %s70
      %p74 = scmp.eq.s32.totalorder %s13, 0
      %p75 = por %p73, %p74
      %p76 = scmp.ne.s32.totalorder %s68, %s70
      %p77 = scmp.eq.s32.totalorder %s18, 1
      %p78 = por %p76, %p77
      %p79 = scmp.ne.s32.totalorder %s70, %s71
      %p80 = scmp.eq.s32.totalorder %s18, 0
      %p81 = por %p79, %p80
      %p82 = scmp.ne.s32.totalorder %s70, %s71
      %p83 = scmp.eq.s32.totalorder %s19, 1
      %p84 = por %p82, %p83
      %p86 = scmp.ne.s32.totalorder %s71, %s85
      %p87 = scmp.eq.s32.totalorder %s19, 0
      %p88 = por %p86, %p87
      %s90 = sadd.s32 %s89, 1
      %p93 = scmp.eq.s32.totalorder %s13, 1
      %p94 = scmp.ne.s32.totalorder %s89, %s91
      %p95 = scmp.eq.s32.totalorder %s13, 0
      %p96 = por %p94, %p95
      %p97 = scmp.ne.s32.totalorder %s89, %s91
      %p98 = scmp.eq.s32.totalorder %s18, 1
      %p99 = por %p97, %p98
      %p100 = scmp.ne.s32.totalorder %s91, %s92
      %p101 = scmp.eq.s32.totalorder %s18, 0
      %p102 = por %p100, %p101
      %p103 = scmp.ne.s32.totalorder %s91, %s92
      %p104 = scmp.eq.s32.totalorder %s19, 1
      %p105 = por %p103, %p104
      %p107 = scmp.ne.s32.totalorder %s92, %s106
      %p108 = scmp.eq.s32.totalorder %s19, 0
      %p109 = por %p107, %p108
      %s110 = ssub.s32 %s13, %s20
      %p111 = scmp.eq.s32.totalorder %s110, 0
      %s113 = sadd.s32 %s112, 1
      %s114 = scalar_select %p111, %s112, %s113
      %p117 = pneg %p111
      %p118 = scmp.eq.s32.totalorder %s13, 1
      %p119 = por %p117, %p118
      %p120 = scmp.ne.s32.totalorder %s112, %s115
      %p121 = scmp.eq.s32.totalorder %s13, 0
      %p122 = por %p120, %p121
      %p123 = scmp.ne.s32.totalorder %s112, %s115
      %p124 = scmp.eq.s32.totalorder %s18, 1
      %p125 = por %p123, %p124
      %p126 = scmp.ne.s32.totalorder %s115, %s116
      %p127 = scmp.eq.s32.totalorder %s18, 0
      %p128 = por %p126, %p127
      %p129 = scmp.ne.s32.totalorder %s115, %s116
      %p130 = scmp.eq.s32.totalorder %s19, 1
      %p131 = por %p129, %p130
      %p133 = scmp.ne.s32.totalorder %s116, %s132
      %p134 = scmp.eq.s32.totalorder %s19, 0
      %p135 = por %p133, %p134
      %p136 = scmp.le.s32.totalorder 1, %s13
      %p137 = scmp.lt.s32.totalorder %s13, 3
      %p138 = pnand %p136, %p137
      %p139 = pneg %p138
      // Predicated region
      $region9: #{tpu_custom_call.1} parent=5 // pred_check
        _
      $region10: #{tpu_custom_call.1} parent=5 // pred_check_branch
        %141 = sbr.rel (%p138) target = $region12
      $region11: #{tpu_custom_call.1} parent=5 // pred_region
        %s142 = ssub.s32 %s13, 1
        // Predicated region
        $region13: #{tpu_custom_call.1} parent=11 // pred_check
          %p143 = pneg %p60
        $region14: #{tpu_custom_call.1} parent=11 // pred_check_branch
          %145 = sbr.rel (%p143) target = $region16
        $region15: #{tpu_custom_call.1} parent=11 // pred_region
          _
        $region16: #{tpu_custom_call.1} parent=11 // pred_fallthru
          _
        // Predicated region
        $region17: #{tpu_custom_call.1} parent=11 // pred_check
          %p146 = pneg %p81
        $region18: #{tpu_custom_call.1} parent=11 // pred_check_branch
          %148 = sbr.rel (%p146) target = $region20
        $region19: #{tpu_custom_call.1} parent=11 // pred_region
          _
        $region20: #{tpu_custom_call.1} parent=11 // pred_fallthru
          _
        // Predicated region
        $region21: #{tpu_custom_call.1} parent=11 // pred_check
          %p149 = pneg %p102
        $region22: #{tpu_custom_call.1} parent=11 // pred_check_branch
          %151 = sbr.rel (%p149) target = $region24
        $region23: #{tpu_custom_call.1} parent=11 // pred_region
          _
        $region24: #{tpu_custom_call.1} parent=11 // pred_fallthru
          _
      $region12: #{tpu_custom_call.1} parent=5 // pred_fallthru
        _
      %p152 = scmp.lt.s32.totalorder %s13, 2
      // Predicated region
      $region25: #{tpu_custom_call.1} parent=5 // pred_check
        %p153 = pneg %p152
      $region26: #{tpu_custom_call.1} parent=5 // pred_check_branch
        %155 = sbr.rel (%p153) target = $region28
      $region27: #{tpu_custom_call.1} parent=5 // pred_region
        // Predicated region
        $region29: #{tpu_custom_call.1} parent=27 // pred_check
          %p156 = pneg %p33
        $region30: #{tpu_custom_call.1} parent=27 // pred_check_branch
          %158 = sbr.rel (%p156) target = $region32
        $region31: #{tpu_custom_call.1} parent=27 // pred_region
          %s159 = smul.u32 64, %s13
          %s160 = ssub.s32 125, %s159
          %p161 = scmp.lt.s32.totalorder %s160, 64
          %s162 = scalar_select %p161, %s160, 64
          %s163 = smul.u32 8, %s162
          %p164 = scmp.lt.s32.totalorder %s159, 124
          %s165 = scalar_select %p164, %s159, 124
          %s166 = smul.addr %s165, 8
          %s167 = scalar_lea.vmem %s0, %s166
          %s168 = smul.u32 64, %s13
          %s169 = ssub.s32 125, %s168
          %p170 = scmp.lt.s32.totalorder %s169, 64
          %s171 = scalar_select %p170, %s169, 64
          %s172 = smul.u32 8, %s171
        $region32: #{tpu_custom_call.1} parent=27 // pred_fallthru
          _
      $region28: #{tpu_custom_call.1} parent=5 // pred_fallthru
        _
      %p173 = scmp.le.s32.totalorder 1, %s13
      %p174 = scmp.lt.s32.totalorder %s13, 3
      %p175 = pnand %p173, %p174
      %p176 = pneg %p175
      // Predicated region
      $region33: #{tpu_custom_call.1} parent=5 // pred_check
        _
      $region34: #{tpu_custom_call.1} parent=5 // pred_check_branch
        %178 = sbr.rel (%p175) target = $region36
      $region35: #{tpu_custom_call.1} parent=5 // pred_region
        %s179 = ssub.s32 %s13, 1
        %s180 = smul.u32 64, %s18
        %s181 = ssub.s32 125, %s180
        %p182 = scmp.lt.s32.totalorder %s181, 64
        %s183 = scalar_select %p182, %s181, 64
        %s184 = smul.u32 8, %s183
        %p185 = scmp.lt.s32.totalorder %s180, 124
        %s186 = scalar_select %p185, %s180, 124
        %s187 = smul.addr %s186, 8
        %s188 = scalar_lea.vmem %s0, %s187
        %p189 = pneg %p39
        %p190 = pneg %p36
        %p191 = pneg %p60
        %p192 = pneg %p57
        %p193 = pneg %p81
        %p194 = pneg %p78
        %p195 = pneg %p102
        %p196 = pneg %p99
        %p197 = pneg %p128
        %p198 = pneg %p125
        %s199 = sand.u32 %s115, 1
        %s200 = scalar_lea.sflag [#allocation3], %s199
        %s201 = sand.u32 %s115, 1
        %s202 = smul.addr %s201, 4
        %s203 = scalar_lea.vmem [#allocation2], %s202
        %s204 = smul.u32 64, %s18
        %s205 = ssub.s32 125, %s204
        %p206 = scmp.lt.s32.totalorder %s205, 64
        %s207 = scalar_select %p206, %s205, 64
        %s208 = smul.u32 8, %s207
        %p209 = scmp.lt.s32.totalorder %s204, 124
        %s210 = scalar_select %p209, %s204, 124
        %s211 = smul.addr %s210, 8
        %s212 = scalar_lea.vmem %s0, %s211
        %s213 = smul.u32 64, %s18
        %s214 = ssub.s32 125, %s213
        %p215 = scmp.lt.s32.totalorder %s214, 64
        %s216 = scalar_select %p215, %s214, 64
        %s217 = smul.u32 8, %s216
        %s218 = smul.u32 4, %s18
        %v220 = vld [vmem:[%s212] sm:$0xff]
        %v221 = vld [vmem:[%s212 + $0x8] sm:$0xff]
        %v222 = vld [vmem:[%s212 + $0x10] sm:$0xff]
        %v223 = vld [vmem:[%s212 + $0x18] sm:$0xff]
        %v224 = vld [vmem:[%s212 + $0x20] sm:$0xff]
        %v225 = vld [vmem:[%s212 + $0x28] sm:$0xff]
        %v226 = vld [vmem:[%s212 + $0x30] sm:$0xff]
        %v227 = vld [vmem:[%s212 + $0x38] sm:$0xff]
        %v228 = vld [vmem:[%s212 + $0x40] sm:$0xff]
        %v229 = vld [vmem:[%s212 + $0x48] sm:$0xff]
        %v230 = vld [vmem:[%s212 + $0x50] sm:$0xff]
        %v231 = vld [vmem:[%s212 + $0x58] sm:$0xff]
        %v232 = vld [vmem:[%s212 + $0x60] sm:$0xff]
        %v233 = vld [vmem:[%s212 + $0x68] sm:$0xff]
        %v234 = vld [vmem:[%s212 + $0x70] sm:$0xff]
        %v235 = vld [vmem:[%s212 + $0x78] sm:$0xff]
        %v236 = vld [vmem:[%s212 + $0x80] sm:$0xff]
        %v237 = vld [vmem:[%s212 + $0x88] sm:$0xff]
        %v238 = vld [vmem:[%s212 + $0x90] sm:$0xff]
        %v239 = vld [vmem:[%s212 + $0x98] sm:$0xff]
        %v240 = vld [vmem:[%s212 + $0xa0] sm:$0xff]
        %v241 = vld [vmem:[%s212 + $0xa8] sm:$0xff]
        %v242 = vld [vmem:[%s212 + $0xb0] sm:$0xff]
        %v243 = vld [vmem:[%s212 + $0xb8] sm:$0xff]
        %v244 = vld [vmem:[%s212 + $0xc0] sm:$0xff]
        %v245 = vld [vmem:[%s212 + $0xc8] sm:$0xff]
        %v246 = vld [vmem:[%s212 + $0xd0] sm:$0xff]
        %v247 = vld [vmem:[%s212 + $0xd8] sm:$0xff]
        %v248 = vld [vmem:[%s212 + $0xe0] sm:$0xff]
        %v249 = vld [vmem:[%s212 + $0xe8] sm:$0xff]
        %v250 = vld [vmem:[%s212 + $0xf0] sm:$0xff]
        %v251 = vld [vmem:[%s212 + $0xf8] sm:$0xff]
        %v252 = vld [vmem:[%s212 + $0x100] sm:$0xff]
        %v253 = vld [vmem:[%s212 + $0x108] sm:$0xff]
        %v254 = vld [vmem:[%s212 + $0x110] sm:$0xff]
        %v255 = vld [vmem:[%s212 + $0x118] sm:$0xff]
        %v256 = vld [vmem:[%s212 + $0x120] sm:$0xff]
        %v257 = vld [vmem:[%s212 + $0x128] sm:$0xff]
        %v258 = vld [vmem:[%s212 + $0x130] sm:$0xff]
        %v259 = vld [vmem:[%s212 + $0x138] sm:$0xff]
        %v260 = vld [vmem:[%s212 + $0x140] sm:$0xff]
        %v261 = vld [vmem:[%s212 + $0x148] sm:$0xff]
        %v262 = vld [vmem:[%s212 + $0x150] sm:$0xff]
        %v263 = vld [vmem:[%s212 + $0x158] sm:$0xff]
        %v264 = vld [vmem:[%s212 + $0x160] sm:$0xff]
        %v265 = vld [vmem:[%s212 + $0x168] sm:$0xff]
        %v266 = vld [vmem:[%s212 + $0x170] sm:$0xff]
        %v267 = vld [vmem:[%s212 + $0x178] sm:$0xff]
        %v268 = vld [vmem:[%s212 + $0x180] sm:$0xff]
        %v269 = vld [vmem:[%s212 + $0x188] sm:$0xff]
        %v270 = vld [vmem:[%s212 + $0x190] sm:$0xff]
        %v271 = vld [vmem:[%s212 + $0x198] sm:$0xff]
        %v272 = vld [vmem:[%s212 + $0x1a0] sm:$0xff]
        %v273 = vld [vmem:[%s212 + $0x1a8] sm:$0xff]
        %v274 = vld [vmem:[%s212 + $0x1b0] sm:$0xff]
        %v275 = vld [vmem:[%s212 + $0x1b8] sm:$0xff]
        %v276 = vld [vmem:[%s212 + $0x1c0] sm:$0xff]
        %v277 = vld [vmem:[%s212 + $0x1c8] sm:$0xff]
        %v278 = vld [vmem:[%s212 + $0x1d0] sm:$0xff]
        %v279 = vld [vmem:[%s212 + $0x1d8] sm:$0xff]
        %v280 = vld [vmem:[%s212 + $0x1e0] sm:$0xff]
        %v281 = vld [vmem:[%s212 + $0x1e8] sm:$0xff]
        %v282 = vld [vmem:[%s212 + $0x1f0] sm:$0xff]
        %v283 = vld [vmem:[%s212 + $0x1f8] sm:$0xff]
        %v284 = vpack.c.bf16 %v221, %v220
        %v285 = vpack.c.bf16 %v223, %v222
        %v286 = vpack.c.bf16 %v225, %v224
        %v287 = vpack.c.bf16 %v227, %v226
        %v288 = vpack.c.bf16 %v229, %v228
        %v289 = vpack.c.bf16 %v231, %v230
        %v290 = vpack.c.bf16 %v233, %v232
        %v291 = vpack.c.bf16 %v235, %v234
        %v292 = vpack.c.bf16 %v237, %v236
        %v293 = vpack.c.bf16 %v239, %v238
        %v294 = vpack.c.bf16 %v241, %v240
        %v295 = vpack.c.bf16 %v243, %v242
        %v296 = vpack.c.bf16 %v245, %v244
        %v297 = vpack.c.bf16 %v247, %v246
        %v298 = vpack.c.bf16 %v249, %v248
        %v299 = vpack.c.bf16 %v251, %v250
        %v300 = vpack.c.bf16 %v253, %v252
        %v301 = vpack.c.bf16 %v255, %v254
        %v302 = vpack.c.bf16 %v257, %v256
        %v303 = vpack.c.bf16 %v259, %v258
        %v304 = vpack.c.bf16 %v261, %v260
        %v305 = vpack.c.bf16 %v263, %v262
        %v306 = vpack.c.bf16 %v265, %v264
        %v307 = vpack.c.bf16 %v267, %v266
        %v308 = vpack.c.bf16 %v269, %v268
        %v309 = vpack.c.bf16 %v271, %v270
        %v310 = vpack.c.bf16 %v273, %v272
        %v311 = vpack.c.bf16 %v275, %v274
        %v312 = vpack.c.bf16 %v277, %v276
        %v313 = vpack.c.bf16 %v279, %v278
        %v314 = vpack.c.bf16 %v281, %v280
        %v315 = vpack.c.bf16 %v283, %v282
        %v316 = vld [vmem:[%s3] sm:$0xff]
        %v317 = vld [vmem:[%s3 + $0x8] sm:$0xff]
        %v318 = vld [vmem:[%s3 + $0x10] sm:$0xff]
        %v319 = vld [vmem:[%s3 + $0x18] sm:$0xff]
        %v320 = vld [vmem:[%s3] sm:$0x1]
        %v321 = vld [vmem:[%s1] sm:$0xf]
        %v322 = vld [vmem:[%s1 + $0x4] sm:$0xf]
        %v323 = vld [vmem:[%s1 + $0x8] sm:$0xf]
        %v324 = vld [vmem:[%s1 + $0xc] sm:$0xf]
        %326 = vset.pattern.permute.xlu0 0
        %327 = vperm.xlu0 %326, %v316
        %v328 = vpop.permute.xlu0 %327
        %331 = vset.pattern.permute.xlu0 0
        %332 = vperm.xlu0 %331, %v317
        %v333 = vpop.permute.xlu0 %332
        %336 = vset.pattern.permute.xlu0 0
        %337 = vperm.xlu0 %336, %v318
        %v338 = vpop.permute.xlu0 %337
        %341 = vset.pattern.permute.xlu0 0
        %342 = vperm.xlu0 %341, %v319
        %v343 = vpop.permute.xlu0 %342
        %v349 = vunpack.c.l.b16 %v321
        %v350 = vunpack.c.l.b16 %v322
        %v351 = vunpack.c.l.b16 %v323
        %v352 = vunpack.c.l.b16 %v324
        %v353 = vpack.c.b16 %v350, %v349
        %v354 = vpack.c.b16 %v352, %v351
        %vm355 = vcmask 195584
        %v357 = vsel %vm355, %v353, 0
        %v360 = vsel %vm355, %v354, 0
        %v363 = vsel %vm355, %v284, 0
        %v366 = vsel %vm355, %v285, 0
        %v369 = vsel %vm355, %v286, 0
        %v372 = vsel %vm355, %v287, 0
        %v375 = vsel %vm355, %v288, 0
        %v378 = vsel %vm355, %v289, 0
        %v381 = vsel %vm355, %v290, 0
        %v384 = vsel %vm355, %v291, 0
        %v387 = vsel %vm355, %v292, 0
        %v390 = vsel %vm355, %v293, 0
        %v393 = vsel %vm355, %v294, 0
        %v396 = vsel %vm355, %v295, 0
        %v399 = vsel %vm355, %v296, 0
        %v402 = vsel %vm355, %v297, 0
        %v405 = vsel %vm355, %v298, 0
        %v408 = vsel %vm355, %v299, 0
        %v411 = vsel %vm355, %v300, 0
        %v414 = vsel %vm355, %v301, 0
        %v417 = vsel %vm355, %v302, 0
        %v420 = vsel %vm355, %v303, 0
        %v423 = vsel %vm355, %v304, 0
        %v426 = vsel %vm355, %v305, 0
        %v429 = vsel %vm355, %v306, 0
        %v432 = vsel %vm355, %v307, 0
        %v435 = vsel %vm355, %v308, 0
        %v438 = vsel %vm355, %v309, 0
        %v441 = vsel %vm355, %v310, 0
        %v444 = vsel %vm355, %v311, 0
        %v447 = vsel %vm355, %v312, 0
        %v450 = vsel %vm355, %v313, 0
        %v453 = vsel %vm355, %v314, 0
        %v456 = vsel %vm355, %v315, 0
        %458 = vmatpush.bf16.xpose.msra.mxu0 %v384
        %459 = vmatpush.bf16.xpose.msra.mxu0 %v381
        %460 = vmatpush.bf16.xpose.msra.mxu0 %v378
        %461 = vmatpush.bf16.xpose.msra.mxu0 %v375
        %462 = vmatpush.bf16.xpose.msra.mxu0 %v372
        %463 = vmatpush.bf16.xpose.msra.mxu0 %v369
        %464 = vmatpush.bf16.xpose.msra.mxu0 %v366
        %465 = vmatpush.bf16.xpose.msra.mxu0 %v363
        %466 = vmatmul.bf16.gmra.mxu0 %v357
        %v467 = vpop.f32.mrf.mxu0
        %v468 = vadd.f32 %v328, %v467
        %v469 = vpop.f32.mrf.mxu0
        %v470 = vadd.f32 %v333, %v469
        %471 = vmatmul.bf16.gmra.mxu0 %v360
        %v472 = vpop.f32.mrf.mxu0
        %v473 = vadd.f32 %v338, %v472
        %v474 = vpop.f32.mrf.mxu0
        %v475 = vadd.f32 %v343, %v474
        %476 = vdwg.mxu0
        %477 = vmatpush.bf16.xpose.msra.mxu0 %v408
        %478 = vmatpush.bf16.xpose.msra.mxu0 %v405
        %479 = vmatpush.bf16.xpose.msra.mxu0 %v402
        %480 = vmatpush.bf16.xpose.msra.mxu0 %v399
        %481 = vmatpush.bf16.xpose.msra.mxu0 %v396
        %482 = vmatpush.bf16.xpose.msra.mxu0 %v393
        %483 = vmatpush.bf16.xpose.msra.mxu0 %v390
        %484 = vmatpush.bf16.xpose.msra.mxu0 %v387
        %485 = vmatmul.bf16.gmra.mxu0 %v357
        %v486 = vpop.f32.mrf.mxu0
        %v487 = vadd.f32 %v328, %v486
        %v488 = vpop.f32.mrf.mxu0
        %v489 = vadd.f32 %v333, %v488
        %490 = vmatmul.bf16.gmra.mxu0 %v360
        %v491 = vpop.f32.mrf.mxu0
        %v492 = vadd.f32 %v338, %v491
        %v493 = vpop.f32.mrf.mxu0
        %v494 = vadd.f32 %v343, %v493
        %495 = vdwg.mxu0
        %496 = vmatpush.bf16.xpose.msra.mxu0 %v432
        %497 = vmatpush.bf16.xpose.msra.mxu0 %v429
        %498 = vmatpush.bf16.xpose.msra.mxu0 %v426
        %499 = vmatpush.bf16.xpose.msra.mxu0 %v423
        %500 = vmatpush.bf16.xpose.msra.mxu0 %v420
        %501 = vmatpush.bf16.xpose.msra.mxu0 %v417
        %502 = vmatpush.bf16.xpose.msra.mxu0 %v414
        %503 = vmatpush.bf16.xpose.msra.mxu0 %v411
        %504 = vmatmul.bf16.gmra.mxu0 %v357
        %v505 = vpop.f32.mrf.mxu0
        %v506 = vadd.f32 %v328, %v505
        %v507 = vpop.f32.mrf.mxu0
        %v508 = vadd.f32 %v333, %v507
        %509 = vmatmul.bf16.gmra.mxu0 %v360
        %v510 = vpop.f32.mrf.mxu0
        %v511 = vadd.f32 %v338, %v510
        %v512 = vpop.f32.mrf.mxu0
        %v513 = vadd.f32 %v343, %v512
        %514 = vdwg.mxu0
        %515 = vmatpush.bf16.xpose.msra.mxu0 %v456
        %516 = vmatpush.bf16.xpose.msra.mxu0 %v453
        %517 = vmatpush.bf16.xpose.msra.mxu0 %v450
        %518 = vmatpush.bf16.xpose.msra.mxu0 %v447
        %519 = vmatpush.bf16.xpose.msra.mxu0 %v444
        %520 = vmatpush.bf16.xpose.msra.mxu0 %v441
        %521 = vmatpush.bf16.xpose.msra.mxu0 %v438
        %522 = vmatpush.bf16.xpose.msra.mxu0 %v435
        %523 = vmatmul.bf16.gmra.mxu0 %v357
        %v524 = vpop.f32.mrf.mxu0
        %v525 = vadd.f32 %v328, %v524
        %v526 = vpop.f32.mrf.mxu0
        %v527 = vadd.f32 %v333, %v526
        %528 = vmatmul.bf16.gmra.mxu0 %v360
        %v529 = vpop.f32.mrf.mxu0
        %v530 = vadd.f32 %v338, %v529
        %v531 = vpop.f32.mrf.mxu0
        %v532 = vadd.f32 %v343, %v531
        %533 = vdwg.mxu0
        %v534 = vmax.f32 %v468, 0.0
        %v535 = vmax.f32 %v487, 0.0
        %v536 = vmax.f32 %v506, 0.0
        %v537 = vmax.f32 %v525, 0.0
        %v538 = vmax.f32 %v470, 0.0
        %v539 = vmax.f32 %v489, 0.0
        %v540 = vmax.f32 %v508, 0.0
        %v541 = vmax.f32 %v527, 0.0
        %v542 = vmax.f32 %v473, 0.0
        %v543 = vmax.f32 %v492, 0.0
        %v544 = vmax.f32 %v511, 0.0
        %v545 = vmax.f32 %v530, 0.0
        %v546 = vmax.f32 %v475, 0.0
        %v547 = vmax.f32 %v494, 0.0
        %v548 = vmax.f32 %v513, 0.0
        %v549 = vmax.f32 %v532, 0.0
        %v550 = vld [vmem:[%s2] sm:$0xf]
        %v551 = vld [vmem:[%s2 + $0x4] sm:$0xf]
        %v552 = vld [vmem:[%s2 + $0x8] sm:$0xf]
        %v553 = vld [vmem:[%s2 + $0xc] sm:$0xf]
        %v554 = vpack.c.bf16 %v538, %v534
        %v555 = vpack.c.bf16 %v539, %v535
        %v556 = vpack.c.bf16 %v540, %v536
        %v557 = vpack.c.bf16 %v541, %v537
        %v558 = vpack.c.bf16 %v546, %v542
        %v559 = vpack.c.bf16 %v547, %v543
        %v560 = vpack.c.bf16 %v548, %v544
        %v561 = vpack.c.bf16 %v549, %v545
        %562 = vset.pattern.permute.xlu0 1
        %563 = vperm.xlu0 %562, %v316
        %v564 = vpop.permute.xlu0 %563
        %566 = vset.pattern.permute.xlu0 1
        %567 = vperm.xlu0 %566, %v317
        %v568 = vpop.permute.xlu0 %567
        %570 = vset.pattern.permute.xlu0 1
        %571 = vperm.xlu0 %570, %v318
        %v572 = vpop.permute.xlu0 %571
        %574 = vset.pattern.permute.xlu0 1
        %575 = vperm.xlu0 %574, %v319
        %v576 = vpop.permute.xlu0 %575
        %v582 = vunpack.c.l.b16 %v550
        %v583 = vunpack.c.l.b16 %v551
        %v584 = vunpack.c.l.b16 %v552
        %v585 = vunpack.c.l.b16 %v553
        %v586 = vpack.c.b16 %v583, %v582
        %v587 = vpack.c.b16 %v585, %v584
        %vm588 = vcmask 261120
        %v590 = vsel %vm588, %v586, 0
        %v593 = vsel %vm588, %v587, 0
        %595 = vmatpush.bf16.msra.mxu0 0
        %596 = vmatpush.bf16.msra.mxu0 0
        %597 = vmatpush.bf16.msra.mxu0 0
        %598 = vmatpush.bf16.msra.mxu0 0
        %599 = vmatpush.bf16.msra.mxu0 0
        %600 = vmatpush.bf16.msra.mxu0 0
        %601 = vmatpush.bf16.msra.mxu0 %v558
        %602 = vmatpush.bf16.msra.mxu0 %v554
        %603 = vmatmul.bf16.gmra.mxu0 %v590
        %v604 = vpop.f32.mrf.mxu0
        %v605 = vadd.f32 %v564, %v604
        %v606 = vpop.f32.mrf.mxu0
        %v607 = vadd.f32 %v568, %v606
        %608 = vmatmul.bf16.gmra.mxu0 %v593
        %v609 = vpop.f32.mrf.mxu0
        %v610 = vadd.f32 %v572, %v609
        %v611 = vpop.f32.mrf.mxu0
        %v612 = vadd.f32 %v576, %v611
        %613 = vdwg.mxu0
        %614 = vmatpush.bf16.msra.mxu0 0
        %615 = vmatpush.bf16.msra.mxu0 0
        %616 = vmatpush.bf16.msra.mxu0 0
        %617 = vmatpush.bf16.msra.mxu0 0
        %618 = vmatpush.bf16.msra.mxu0 0
        %619 = vmatpush.bf16.msra.mxu0 0
        %620 = vmatpush.bf16.msra.mxu0 %v559
        %621 = vmatpush.bf16.msra.mxu0 %v555
        %622 = vmatmul.bf16.gmra.mxu0 %v590
        %v623 = vpop.f32.mrf.mxu0
        %v624 = vadd.f32 %v564, %v623
        %v625 = vpop.f32.mrf.mxu0
        %v626 = vadd.f32 %v568, %v625
        %627 = vmatmul.bf16.gmra.mxu0 %v593
        %v628 = vpop.f32.mrf.mxu0
        %v629 = vadd.f32 %v572, %v628
        %v630 = vpop.f32.mrf.mxu0
        %v631 = vadd.f32 %v576, %v630
        %632 = vdwg.mxu0
        %633 = vmatpush.bf16.msra.mxu0 0
        %634 = vmatpush.bf16.msra.mxu0 0
        %635 = vmatpush.bf16.msra.mxu0 0
        %636 = vmatpush.bf16.msra.mxu0 0
        %637 = vmatpush.bf16.msra.mxu0 0
        %638 = vmatpush.bf16.msra.mxu0 0
        %639 = vmatpush.bf16.msra.mxu0 %v560
        %640 = vmatpush.bf16.msra.mxu0 %v556
        %641 = vmatmul.bf16.gmra.mxu0 %v590
        %v642 = vpop.f32.mrf.mxu0
        %v643 = vadd.f32 %v564, %v642
        %v644 = vpop.f32.mrf.mxu0
        %v645 = vadd.f32 %v568, %v644
        %646 = vmatmul.bf16.gmra.mxu0 %v593
        %v647 = vpop.f32.mrf.mxu0
        %v648 = vadd.f32 %v572, %v647
        %v649 = vpop.f32.mrf.mxu0
        %v650 = vadd.f32 %v576, %v649
        %651 = vdwg.mxu0
        %652 = vmatpush.bf16.msra.mxu0 0
        %653 = vmatpush.bf16.msra.mxu0 0
        %654 = vmatpush.bf16.msra.mxu0 0
        %655 = vmatpush.bf16.msra.mxu0 0
        %656 = vmatpush.bf16.msra.mxu0 0
        %657 = vmatpush.bf16.msra.mxu0 0
        %658 = vmatpush.bf16.msra.mxu0 %v561
        %659 = vmatpush.bf16.msra.mxu0 %v557
        %660 = vmatmul.bf16.gmra.mxu0 %v590
        %v661 = vpop.f32.mrf.mxu0
        %v662 = vadd.f32 %v564, %v661
        %v663 = vpop.f32.mrf.mxu0
        %v664 = vadd.f32 %v568, %v663
        %665 = vmatmul.bf16.gmra.mxu0 %v593
        %v666 = vpop.f32.mrf.mxu0
        %v667 = vadd.f32 %v572, %v666
        %v668 = vpop.f32.mrf.mxu0
        %v669 = vadd.f32 %v576, %v668
        %670 = vdwg.mxu0
        %v671 = vmax.f32 %v605, 0.0
        %v672 = vmax.f32 %v624, 0.0
        %v673 = vmax.f32 %v643, 0.0
        %v674 = vmax.f32 %v662, 0.0
        %v675 = vmax.f32 %v607, 0.0
        %v676 = vmax.f32 %v626, 0.0
        %v677 = vmax.f32 %v645, 0.0
        %v678 = vmax.f32 %v664, 0.0
        %v679 = vmax.f32 %v610, 0.0
        %v680 = vmax.f32 %v629, 0.0
        %v681 = vmax.f32 %v648, 0.0
        %v682 = vmax.f32 %v667, 0.0
        %v683 = vmax.f32 %v612, 0.0
        %v684 = vmax.f32 %v631, 0.0
        %v685 = vmax.f32 %v650, 0.0
        %v686 = vmax.f32 %v669, 0.0
        %687 = vset.pattern.permute.xlu0 2
        %688 = vperm.xlu0 %687, %v316
        %v689 = vpop.permute.xlu0 %688
        %691 = vset.pattern.permute.xlu0 2
        %692 = vperm.xlu0 %691, %v317
        %v693 = vpop.permute.xlu0 %692
        %695 = vset.pattern.permute.xlu0 2
        %696 = vperm.xlu0 %695, %v318
        %v697 = vpop.permute.xlu0 %696
        %699 = vset.pattern.permute.xlu0 2
        %700 = vperm.xlu0 %699, %v319
        %v701 = vpop.permute.xlu0 %700
        %v703 = vmul.f32 %v671, %v689
        %v704 = vmul.f32 %v672, %v689
        %v705 = vmul.f32 %v673, %v689
        %v706 = vmul.f32 %v674, %v689
        %v707 = vmul.f32 %v675, %v693
        %v708 = vmul.f32 %v676, %v693
        %v709 = vmul.f32 %v677, %v693
        %v710 = vmul.f32 %v678, %v693
        %v711 = vmul.f32 %v679, %v697
        %v712 = vmul.f32 %v680, %v697
        %v713 = vmul.f32 %v681, %v697
        %v714 = vmul.f32 %v682, %v697
        %v715 = vmul.f32 %v683, %v701
        %v716 = vmul.f32 %v684, %v701
        %v717 = vmul.f32 %v685, %v701
        %v718 = vmul.f32 %v686, %v701
        %v719 = vadd.f32 %v703, %v707
        %v720 = vadd.f32 %v719, %v711
        %v721 = vadd.f32 %v720, %v715
        %v722 = vrot.slane %v721, 4
        %v723 = vadd.f32 %v721, %v722
        %v724 = vrot.slane %v723, 2
        %v725 = vadd.f32 %v723, %v724
        %v726 = vrot.slane %v725, 1
        %v727 = vadd.f32 %v725, %v726
        %v728 = vadd.f32 %v704, %v708
        %v729 = vadd.f32 %v728, %v712
        %v730 = vadd.f32 %v729, %v716
        %v731 = vrot.slane %v730, 4
        %v732 = vadd.f32 %v730, %v731
        %v733 = vrot.slane %v732, 2
        %v734 = vadd.f32 %v732, %v733
        %v735 = vrot.slane %v734, 1
        %v736 = vadd.f32 %v734, %v735
        %v737 = vadd.f32 %v705, %v709
        %v738 = vadd.f32 %v737, %v713
        %v739 = vadd.f32 %v738, %v717
        %v740 = vrot.slane %v739, 4
        %v741 = vadd.f32 %v739, %v740
        %v742 = vrot.slane %v741, 2
        %v743 = vadd.f32 %v741, %v742
        %v744 = vrot.slane %v743, 1
        %v745 = vadd.f32 %v743, %v744
        %v746 = vadd.f32 %v706, %v710
        %v747 = vadd.f32 %v746, %v714
        %v748 = vadd.f32 %v747, %v718
        %v749 = vrot.slane %v748, 4
        %v750 = vadd.f32 %v748, %v749
        %v751 = vrot.slane %v750, 2
        %v752 = vadd.f32 %v750, %v751
        %v753 = vrot.slane %v752, 1
        %v754 = vadd.f32 %v752, %v753
        %756 = vset.pattern.permute.xlu0 3
        %757 = vperm.xlu0 %756, %v320
        %v758 = vpop.permute.xlu0 %757
        %v760 = vadd.f32 %v727, %v758
        %v761 = vadd.f32 %v736, %v758
        %v762 = vadd.f32 %v745, %v758
        %v763 = vadd.f32 %v754, %v758
        %v768 = vrot.slane %v761, 7
        %v769 = vrot.slane %v762, 6
        %v770 = vrot.slane %v763, 5
        %vm771 = vcmask 1040384
        %v772 = vsel %vm771, %v760, %v768
        %vm773 = vcmask 1042434
        %v774 = vsel %vm773, %v769, %v770
        %vm775 = vcmask 1041408
        %v776 = vsel %vm775, %v772, %v774
        %v778 = vlaneseq
        %vm779 = vcmp.ge.s32.totalorder %v778, 0
        %vm780 = vcmp.lt.s32.totalorder %v778, 512
        %vm781 = vmand %vm779, %vm780
        %782 = vst.msk [vmem:[%s203] sm:$0xf] %vm781, %v776
        %s783 = sand.u32 %s115, 1
        %s784 = scalar_lea.sflag [#allocation3], %s783
        %s785 = sand.u32 %s115, 1
        %s786 = smul.addr %s785, 4
        %s787 = scalar_lea.vmem [#allocation2], %s786
        // Predicated region
        $region37: #{tpu_custom_call.1} parent=35 // pred_check
          %p788 = pneg %p125
        $region38: #{tpu_custom_call.1} parent=35 // pred_check_branch
          %790 = sbr.rel (%p788) target = $region40
        $region39: #{tpu_custom_call.1} parent=35 // pred_region
          %s791 = smul.u32 4, %s18
          %793 = vsyncadd %s784, 0
          %s794 = scalar_lea.hbm %s4, %s791
          %s796 = sshll.u32 %s787, 4
          %s797 = int_to_ptr.vmem [resolvable:$true] %s796
          %s798 = sshll.u32 %s794, 4
          %s799 = int_to_ptr.hbm [resolvable:$true] %s798
          %801 = dma.vmem_to_hbm [thread:$0]  %s797, 64, %s799, %s784
        $region40: #{tpu_custom_call.1} parent=35 // pred_fallthru
          _
      $region36: #{tpu_custom_call.1} parent=5 // pred_fallthru
        _
      %p802 = scmp.le.s32.totalorder 2, %s13
      // Predicated region
      $region41: #{tpu_custom_call.1} parent=5 // pred_check
        %p803 = pneg %p802
      $region42: #{tpu_custom_call.1} parent=5 // pred_check_branch
        %805 = sbr.rel (%p803) target = $region44
      $region43: #{tpu_custom_call.1} parent=5 // pred_region
        %s806 = ssub.s32 %s13, 2
        // Predicated region
        $region45: #{tpu_custom_call.1} parent=43 // pred_check
          %p807 = pneg %p131
        $region46: #{tpu_custom_call.1} parent=43 // pred_check_branch
          %809 = sbr.rel (%p807) target = $region48
        $region47: #{tpu_custom_call.1} parent=43 // pred_region
          %s810 = sand.u32 %s116, 1
          %s811 = scalar_lea.sflag [#allocation3], %s810
          %s812 = sand.u32 %s116, 1
          %s813 = smul.addr %s812, 4
          %s814 = scalar_lea.vmem [#allocation2], %s813
          %816 = dma.done %s811, 64
        $region48: #{tpu_custom_call.1} parent=43 // pred_fallthru
          _
      $region44: #{tpu_custom_call.1} parent=5 // pred_fallthru
        _
    $region6: #{tpu_custom_call.1} parent=1 // loop_footer
      %s17 = sadd.s32 1, %s13
    $region7: #{tpu_custom_call.1} parent=1 // loop_footer_branch
      %12 = sbr.rel target = $region3
    $region8: #{tpu_custom_call.1} parent=1 // loop_exit
      _
    %817 = vsyncpa [#allocation3], 1
    %s818 = scalar_lea.sflag [#allocation3], 1
    %819 = vsyncpa %s818, 1

</llo_original>
